<compile_context>
chip_gen: v5e
topology: v5e:2x2
jax: 0.10.0
libtpu: 0.0.40
codegen_flags: <defaults>
</compile_context>

<pallas_src>
import jax
import jax.numpy as jnp
from jax.experimental import pallas as pl
from jax.experimental.pallas import tpu as pltpu

_LANE = 128
_TARGET_BLOCK_BYTES = 4 * 1024 * 1024    # per-operand block; x4 when double-buffered
_MIN_GRID_STEPS = 8                      # keep both v7x TensorCores / megacore busy
_VMEM_LIMIT_BYTES = 32 * 1024 * 1024     # <= scoped/physical VMEM on v5e/v6e/v7x


def _round_up(v, q):
    return ((v + q - 1) // q) * q


def _sublane_quantum(dtype):
    return {4: 8, 2: 16, 1: 32}.get(jnp.dtype(dtype).itemsize, 8)


def _pair_softmax_kernel(z_ref, o_ref):
    # z_ref / o_ref: (1, 2, block_rows, 128); index 1 selects the pair half.
    a = z_ref[0, 0, :, :].astype(jnp.float32)
    b = z_ref[0, 1, :, :].astype(jnp.float32)
    d = b - a
    # Stable pair softmax, one EUP exp:
    #   t = exp(-|d|) in (0, 1] (never overflows)
    #   larger prob = 1/(1+t), smaller prob = t/(1+t) (relative-accurate).
    t = jnp.exp(-jnp.abs(d))
    big = pl.reciprocal(1.0 + t, approx=False)   # full precision for 1e-6 check
    small = t * big
    b_ge_a = d >= 0
    pa = jnp.where(b_ge_a, small, big)
    pb = jnp.where(b_ge_a, big, small)
    o_ref[0, 0, :, :] = pa.astype(o_ref.dtype)
    o_ref[0, 1, :, :] = pb.astype(o_ref.dtype)


def _pair_softmax_planes(xv):
    """xv: (P, 2, R, 128); returns same-shaped softmax over axis 1."""
    p_planes, two, rows, lane = xv.shape
    assert two == 2 and lane == _LANE
    dtype = xv.dtype
    esize = jnp.dtype(dtype).itemsize
    q = _sublane_quantum(dtype)

    # ~4 MiB per operand block, rounded down to the sublane quantum.
    br_max = max(q, (_TARGET_BLOCK_BYTES // (2 * _LANE * esize)) // q * q)
    # Aim for >= _MIN_GRID_STEPS grid steps so parallel grid axes can shard.
    target_spatial_steps = max(1, -(-_MIN_GRID_STEPS // p_planes))
    br = _round_up(-(-rows // target_spatial_steps), q)
    br = min(br, br_max)
    if br >= rows:
        br = rows            # full-dim block: always layout-legal

    grid = (p_planes, pl.cdiv(rows, br))
    blk = pl.BlockSpec((1, 2, br, _LANE), lambda p, j: (p, 0, j, 0))

    n_elems = p_planes * 2 * rows * _LANE
    cost = pl.CostEstimate(
        flops=4 * n_elems,
        transcendentals=n_elems // 2,
        bytes_accessed=2 * n_elems * esize,
    )

    return pl.pallas_call(
        _pair_softmax_kernel,
        out_shape=jax.ShapeDtypeStruct((p_planes, 2, rows, _LANE), dtype),
        grid_spec=pltpu.PrefetchScalarGridSpec(
            num_scalar_prefetch=0,
            grid=grid,
            in_specs=[blk],
            out_specs=blk,
        ),
        compiler_params=pltpu.CompilerParams(
            dimension_semantics=("parallel", "parallel"),
            vmem_limit_bytes=_VMEM_LIMIT_BYTES,
        ),
        cost_estimate=cost,
    )(xv)


def output2_forward(x):
    """Pallas equivalent of Output2.forward for a 5-D NCDHW input."""
    assert x.ndim == 5, "Output2 expects a 5-D NCDHW tensor"
    n, c, d, h, w = x.shape
    numel = n * c * d * h * w
    assert numel % 2 == 0, "total element count must be even"
    m = numel // 2
    dhw = d * h * w

    if c % 2 == 0:
        # Pairs are channels (2k, 2k+1) at one spatial position.  Feed x to the
        # kernel directly: x.reshape(N*C2, 2, DHW) is a free view where pair
        # half j of pair-plane p lives at [p, j, :].  No wrapper slab copy.
        c2 = c // 2
        p_planes = n * c2
        if dhw % _LANE == 0:
            xv = x.reshape(p_planes, 2, dhw // _LANE, _LANE)       # free reshape
            o = _pair_softmax_planes(xv)
            o = o.reshape(n, c2, 2, dhw)
        else:
            # Rare: spatial size not lane-aligned -> pad once in the wrapper.
            pad = (-dhw) % _LANE
            xv = jnp.pad(x.reshape(p_planes, 2, dhw), ((0, 0), (0, 0), (0, pad)))
            xv = xv.reshape(p_planes, 2, (dhw + pad) // _LANE, _LANE)
            o = _pair_softmax_planes(xv)
            o = o.reshape(p_planes, 2, dhw + pad)[:, :, :dhw]
            o = o.reshape(n, c2, 2, dhw)
        # (n, k, j, s) -> (n, s, k, j): the pair dim must be innermost in the
        # (M, 2) result, i.e. a stride-2 element interleave that a lane-dense
        # Pallas tile cannot store directly; one fused XLA transpose does it.
        # TODO(synk): in-kernel lane interleave would need a perfect-shuffle
        # relayout whose XLU cost exceeds this single XLA pass.
        out = jnp.transpose(o, (0, 3, 1, 2)).reshape(m, 2)
    else:
        # Odd channel count: pairs straddle spatial positions in NDHWC order.
        # Correct but XLA-gather-heavy fallback; not expected in DenseVNet.
        flat = jnp.transpose(x, (0, 2, 3, 4, 1)).reshape(-1)
        a_half = flat[0::2]
        b_half = flat[1::2]
        pad = (-m) % _LANE
        z = jnp.stack([a_half, b_half], axis=0)
        z = jnp.pad(z, ((0, 0), (0, pad))).reshape(1, 2, (m + pad) // _LANE, _LANE)
        o = _pair_softmax_planes(z).reshape(2, m + pad)
        out = jnp.stack([o[0, :m], o[1, :m]], axis=1)
    return out


if __name__ == "__main__":
    key = jax.random.PRNGKey(0)
    k0, k1, k2 = jax.random.split(key, 3)

    def reference(x):
        return jax.nn.softmax(
            jnp.transpose(x, (0, 2, 3, 4, 1)).reshape(-1, 2), axis=1)

    # Canonical DenseVNet case: 2 channels (binary pair softmax), NCDHW.
    x = jax.random.normal(k0, (2, 2, 4, 8, 8), dtype=jnp.float32)
    out = jax.block_until_ready(output2_forward(x))
    ref = reference(x)
    assert out.shape == ref.shape
    assert jnp.allclose(out, ref, atol=1e-6, rtol=1e-6)

    # Even channel count > 2 (channel-pair planes, same kernel).
    x4 = jax.random.normal(k1, (1, 4, 2, 8, 8), dtype=jnp.float32)
    out4 = jax.block_until_ready(output2_forward(x4))
    assert jnp.allclose(out4, reference(x4), atol=1e-6, rtol=1e-6)

    # Odd channel count fallback (pairs straddle spatial positions).
    x3 = jax.random.normal(k2, (2, 3, 2, 4, 4), dtype=jnp.float32)
    out3 = jax.block_until_ready(output2_forward(x3))
    assert jnp.allclose(out3, reference(x3), atol=1e-6, rtol=1e-6)

    print("KERNEL_OK")
</pallas_src>

<mosaic_0001>
module attributes {stable_mosaic.version = 11 : i64} {
  func.func @_pair_softmax_kernel(%arg0: i32, %arg1: i32, %arg2: memref<1x2x2x128xf32, #tpu.memory_space<vmem>>, %arg3: memref<1x2x2x128xf32, #tpu.memory_space<vmem>>) attributes {dimension_semantics = [#tpu.dimension_semantics<parallel>, #tpu.dimension_semantics<parallel>], iteration_bounds = array<i64: 2, 1>, scalar_prefetch = 0 : i64, scratch_operands = 0 : i64, tpu.core_type = #tpu.core_type<tc>, window_params = [{transform_indices = @transform_0, window_bounds = array<i64: 1, 2, 2, 128>}, {transform_indices = @transform_1, window_bounds = array<i64: 1, 2, 2, 128>}]} {
    %c0 = arith.constant 0 : index
    %c0_0 = arith.constant 0 : index
    %c0_1 = arith.constant 0 : index
    %c0_2 = arith.constant 0 : index
    %0 = vector.load %arg2[%c0, %c0_0, %c0_1, %c0_2] : memref<1x2x2x128xf32, #tpu.memory_space<vmem>>, vector<1x1x2x128xf32>
    %1 = vector.shape_cast %0 : vector<1x1x2x128xf32> to vector<2x128xf32>
    %c0_3 = arith.constant 0 : index
    %c1 = arith.constant 1 : index
    %c0_4 = arith.constant 0 : index
    %c0_5 = arith.constant 0 : index
    %2 = vector.load %arg2[%c0_3, %c1, %c0_4, %c0_5] : memref<1x2x2x128xf32, #tpu.memory_space<vmem>>, vector<1x1x2x128xf32>
    %3 = vector.shape_cast %2 : vector<1x1x2x128xf32> to vector<2x128xf32>
    %4 = arith.subf %3, %1 : vector<2x128xf32>
    %5 = math.absf %4 : vector<2x128xf32>
    %cst = arith.constant 0.000000e+00 : f32
    %6 = vector.broadcast %cst : f32 to vector<2x128xf32>
    %7 = arith.subf %6, %5 : vector<2x128xf32>
    %8 = math.exp %7 : vector<2x128xf32>
    %cst_6 = arith.constant 1.000000e+00 : f32
    %9 = vector.broadcast %cst_6 : f32 to vector<2x128xf32>
    %10 = arith.addf %9, %8 : vector<2x128xf32>
    %11 = tpu.reciprocal %10 : vector<2x128xf32> -> vector<2x128xf32>
    %12 = arith.mulf %8, %11 : vector<2x128xf32>
    %cst_7 = arith.constant 0.000000e+00 : f32
    %13 = vector.broadcast %cst_7 : f32 to vector<2x128xf32>
    %14 = arith.cmpf oge, %4, %13 : vector<2x128xf32>
    %15 = arith.select %14, %12, %11 : vector<2x128xi1>, vector<2x128xf32>
    %16 = arith.select %14, %11, %12 : vector<2x128xi1>, vector<2x128xf32>
    %c0_8 = arith.constant 0 : index
    %c0_9 = arith.constant 0 : index
    %c0_10 = arith.constant 0 : index
    %c0_11 = arith.constant 0 : index
    %17 = vector.load %arg3[%c0_8, %c0_9, %c0_10, %c0_11] : memref<1x2x2x128xf32, #tpu.memory_space<vmem>>, vector<1x1x2x128xf32>
    %18 = vector.shape_cast %17 : vector<1x1x2x128xf32> to vector<2x128xf32>
    %19 = vector.shape_cast %15 : vector<2x128xf32> to vector<1x1x2x128xf32>
    tpu.vector_store %arg3[%c0_8, %c0_9, %c0_10, %c0_11], %19 {strides = array<i32>} : memref<1x2x2x128xf32, #tpu.memory_space<vmem>>, vector<1x1x2x128xf32>,
    %c0_12 = arith.constant 0 : index
    %c1_13 = arith.constant 1 : index
    %c0_14 = arith.constant 0 : index
    %c0_15 = arith.constant 0 : index
    %20 = vector.load %arg3[%c0_12, %c1_13, %c0_14, %c0_15] : memref<1x2x2x128xf32, #tpu.memory_space<vmem>>, vector<1x1x2x128xf32>
    %21 = vector.shape_cast %20 : vector<1x1x2x128xf32> to vector<2x128xf32>
    %22 = vector.shape_cast %16 : vector<2x128xf32> to vector<1x1x2x128xf32>
    tpu.vector_store %arg3[%c0_12, %c1_13, %c0_14, %c0_15], %22 {strides = array<i32>} : memref<1x2x2x128xf32, #tpu.memory_space<vmem>>, vector<1x1x2x128xf32>,
    return
  }
  func.func @transform_0(%arg0: i32, %arg1: i32) -> (i32, i32, i32, i32) {
    %c0_i32 = arith.constant 0 : i32
    %c0_i32_0 = arith.constant 0 : i32
    %c0_i32_1 = arith.constant 0 : i32
    return %arg0, %c0_i32, %arg1, %c0_i32_0 : i32, i32, i32, i32
  }
  func.func @transform_1(%arg0: i32, %arg1: i32) -> (i32, i32, i32, i32) {
    %c0_i32 = arith.constant 0 : i32
    %c0_i32_0 = arith.constant 0 : i32
    %c0_i32_1 = arith.constant 0 : i32
    return %arg0, %c0_i32, %arg1, %c0_i32_0 : i32, i32, i32, i32
  }
}

</mosaic_0001>

<llo_original>
// kernel: tpu_custom_call.1
$region0: #{tpu_custom_call.1}
  #allocation0 [shape = 'u32[]', space=smem, size = 0x4, offset = 0x4, fixed_abs, tag = 'smem constant byte address 0x4 - core index']
  #allocation1 [shape = 'u32[72,128]{1,0:T(1,128)}', space=vmem, size = 0x9000, scoped, tag = 'internal scratch']
  %s0 = inlined_call_operand.hbm [shape: f32[2,2,2,128], index: 0, kind: input, shape index: {}]
  %s1 = inlined_call_operand.hbm [shape: f32[2,2,2,128], index: 1, kind: output, shape index: {}]
  %s2 = sld [smem:[#allocation0]]
  $region41: #{tpu_custom_call.1} parent=0
    _
  %s4 = ssub.s32 1, %s2
  %s5 = scalar_select 0, %s4, %s2
  $region1: #{tpu_custom_call.1} parent=0
    #allocation2 [shape = 'u8[4096]{0}', space=vmem, size = 0x1000, scoped, tag = 'input window, operand 0']
    #allocation3 [shape = 's32[2]{0}', space=sflag, size = 0x8, scoped, tag = 'scoped memory for tpu_custom_call.1']
    #allocation4 [shape = 's32[2]{0}', space=sflag, size = 0x8, scoped, tag = 'scoped memory for tpu_custom_call.1']
    #allocation5 [shape = 'u8[4096]{0}', space=vmem, size = 0x1000, scoped, tag = 'output window, operand 0']
    %6 = vsyncpa [#allocation3], 0
    %s7 = scalar_lea.sflag [#allocation3], 1
    %8 = vsyncpa %s7, 0
    %9 = vsyncpa [#allocation4], 0
    %s10 = scalar_lea.sflag [#allocation4], 1
    %11 = vsyncpa %s10, 0
    loop: start=0, step=1, limit=4
    $region2: #{tpu_custom_call.1} parent=1 // loop_pre_header
      _
    $region3: #{tpu_custom_call.1} parent=1 // loop_header
      %s13 = sphi 0, %s17
      %p14 = scmp.ge.s32.totalorder %s13, 4
      %s20 = sphi 0, %s32
      %s21 = sphi 0, %s28
      %s22 = sphi 0, %s20
      %s23 = sphi 0, %s21
      %s24 = sphi 0, %s22
      %s25 = sphi 0, %s23
      %s37 = sphi 0, %s39
      %s40 = sphi 0, %s37
      %s41 = sphi 0, %s40
      %s57 = sphi 0, %s41
      %s65 = sphi 0, %s67
      %s68 = sphi 0, %s65
      %s69 = sphi 0, %s68
      %s85 = sphi 0, %s69
    $region4: #{tpu_custom_call.1} parent=1 // loop_header_branch
      %16 = sbr.rel (%p14) target = $region8
    $region5: #{tpu_custom_call.1} parent=1 // loop_body
      %s18 = ssub.s32 %s13, 1
      %s19 = ssub.s32 %s13, 2
      %s26 = sadd.s32 1, %s21
      %p27 = scmp.ge.s32.totalorder %s26, 1
      %s28 = scalar_select %p27, 0, %s26
      %s29 = sadd.s32 1, %s20
      %s30 = scalar_select %p27, %s29, %s20
      %p31 = scmp.ge.s32.totalorder %s30, 2
      %s32 = scalar_select %p31, 0, %s30
      %s33 = ssub.s32 %s20, %s32
      %s34 = ssub.s32 %s21, %s28
      %s35 = sor.u32 %s33, %s34
      %p36 = scmp.eq.s32.totalorder %s35, 0
      %s38 = sadd.s32 %s37, 1
      %s39 = scalar_select %p36, %s37, %s38
      %p42 = pneg %p36
      %p43 = scmp.eq.s32.totalorder %s13, 1
      %p44 = por %p42, %p43
      %p45 = scmp.ne.s32.totalorder %s37, %s40
      %p46 = scmp.eq.s32.totalorder %s13, 0
      %p47 = por %p45, %p46
      %p48 = scmp.ne.s32.totalorder %s37, %s40
      %p49 = scmp.eq.s32.totalorder %s18, 1
      %p50 = por %p48, %p49
      %p51 = scmp.ne.s32.totalorder %s40, %s41
      %p52 = scmp.eq.s32.totalorder %s18, 0
      %p53 = por %p51, %p52
      %p54 = scmp.ne.s32.totalorder %s40, %s41
      %p55 = scmp.eq.s32.totalorder %s19, 1
      %p56 = por %p54, %p55
      %p58 = scmp.ne.s32.totalorder %s41, %s57
      %p59 = scmp.eq.s32.totalorder %s19, 0
      %p60 = por %p58, %p59
      %s61 = ssub.s32 %s20, %s32
      %s62 = ssub.s32 %s21, %s28
      %s63 = sor.u32 %s61, %s62
      %p64 = scmp.eq.s32.totalorder %s63, 0
      %s66 = sadd.s32 %s65, 1
      %s67 = scalar_select %p64, %s65, %s66
      %p70 = pneg %p64
      %p71 = scmp.eq.s32.totalorder %s13, 1
      %p72 = por %p70, %p71
      %p73 = scmp.ne.s32.totalorder %s65, %s68
      %p74 = scmp.eq.s32.totalorder %s13, 0
      %p75 = por %p73, %p74
      %p76 = scmp.ne.s32.totalorder %s65, %s68
      %p77 = scmp.eq.s32.totalorder %s18, 1
      %p78 = por %p76, %p77
      %p79 = scmp.ne.s32.totalorder %s68, %s69
      %p80 = scmp.eq.s32.totalorder %s18, 0
      %p81 = por %p79, %p80
      %p82 = scmp.ne.s32.totalorder %s68, %s69
      %p83 = scmp.eq.s32.totalorder %s19, 1
      %p84 = por %p82, %p83
      %p86 = scmp.ne.s32.totalorder %s69, %s85
      %p87 = scmp.eq.s32.totalorder %s19, 0
      %p88 = por %p86, %p87
      %p89 = scmp.le.s32.totalorder 1, %s13
      %p90 = scmp.lt.s32.totalorder %s13, 3
      %p91 = pnand %p89, %p90
      %p92 = pneg %p91
      // Predicated region
      $region9: #{tpu_custom_call.1} parent=5 // pred_check
        _
      $region10: #{tpu_custom_call.1} parent=5 // pred_check_branch
        %94 = sbr.rel (%p91) target = $region12
      $region11: #{tpu_custom_call.1} parent=5 // pred_region
        %s95 = ssub.s32 %s13, 1
      $region12: #{tpu_custom_call.1} parent=5 // pred_fallthru
        _
      %p96 = scmp.lt.s32.totalorder %s13, 2
      // Predicated region
      $region13: #{tpu_custom_call.1} parent=5 // pred_check
        %p97 = pneg %p96
      $region14: #{tpu_custom_call.1} parent=5 // pred_check_branch
        %99 = sbr.rel (%p97) target = $region16
      $region15: #{tpu_custom_call.1} parent=5 // pred_region
        // Predicated region
        $region17: #{tpu_custom_call.1} parent=15 // pred_check
          %p100 = pneg %p47
        $region18: #{tpu_custom_call.1} parent=15 // pred_check_branch
          %102 = sbr.rel (%p100) target = $region20
        $region19: #{tpu_custom_call.1} parent=15 // pred_region
          %s103 = sand.u32 %s37, 1
          %s104 = scalar_lea.sflag [#allocation3], %s103
          %s105 = sand.u32 %s37, 1
          %s106 = smul.addr %s105, 4
          %s107 = scalar_lea.vmem [#allocation2], %s106
          %109 = vsyncadd %s104, 0
          %s110 = smul.addr %s20, 2
          %s111 = sadd.s32 %s21, %s110
          %s112 = smul.addr %s111, 2
          %s113 = scalar_lea.hbm %s0, %s112
          %s114 = sshll.u32 %s113, 4
          %s115 = int_to_ptr.hbm [resolvable:$true] %s114
          %s116 = sshll.u32 %s107, 4
          %s117 = int_to_ptr.vmem [resolvable:$true] %s116
          %122 = dma.hbm_to_vmem [thread:$0]  %s115, 64, %s117, %s104, 32, 32, 2
        $region20: #{tpu_custom_call.1} parent=15 // pred_fallthru
          _
      $region16: #{tpu_custom_call.1} parent=5 // pred_fallthru
        _
      %p123 = scmp.le.s32.totalorder 1, %s13
      %p124 = scmp.lt.s32.totalorder %s13, 3
      %p125 = pnand %p123, %p124
      %p126 = pneg %p125
      // Predicated region
      $region21: #{tpu_custom_call.1} parent=5 // pred_check
        _
      $region22: #{tpu_custom_call.1} parent=5 // pred_check_branch
        %128 = sbr.rel (%p125) target = $region24
      $region23: #{tpu_custom_call.1} parent=5 // pred_region
        %s129 = ssub.s32 %s13, 1
        %s130 = sand.u32 %s40, 1
        %s131 = scalar_lea.sflag [#allocation3], %s130
        %s132 = sand.u32 %s40, 1
        %s133 = smul.addr %s132, 4
        %s134 = scalar_lea.vmem [#allocation2], %s133
        // Predicated region
        $region25: #{tpu_custom_call.1} parent=23 // pred_check
          %p135 = pneg %p53
        $region26: #{tpu_custom_call.1} parent=23 // pred_check_branch
          %137 = sbr.rel (%p135) target = $region28
        $region27: #{tpu_custom_call.1} parent=23 // pred_region
          %139 = dma.done %s131, 64
        $region28: #{tpu_custom_call.1} parent=23 // pred_fallthru
          _
        %s140 = sand.u32 %s40, 1
        %s141 = scalar_lea.sflag [#allocation3], %s140
        %s142 = sand.u32 %s40, 1
        %s143 = smul.addr %s142, 4
        %s144 = scalar_lea.vmem [#allocation2], %s143
        %p145 = pneg %p53
        %p146 = pneg %p50
        %p147 = pneg %p81
        %p148 = pneg %p78
        %s149 = sand.u32 %s68, 1
        %s150 = scalar_lea.sflag [#allocation4], %s149
        %s151 = sand.u32 %s68, 1
        %s152 = smul.addr %s151, 4
        %s153 = scalar_lea.vmem [#allocation5], %s152
        %v154 = vld [vmem:[%s134] sm:$0x3]
        %s155 = scalar_lea.vmem %s134, 2 [#allocation2]
        %v156 = vld [vmem:[%s155] sm:$0x3]
        %v157 = vsub.f32 %v156, %v154
        %v158 = vand.u32 2147483647, %v157
        %v159 = vsub.f32 0.0, %v158
        %v160 = vmul.f32 %v159, 1.442695
        %v161 = vpow.pop %v160
        %v162 = vadd.f32 %v161, 1.0
        %v163 = vrcp.pop %v162
        %v164 = vmul.f32 %v162, %v163
        %v165 = vsub.f32 1.0, %v164
        %v166 = vmul.f32 %v163, %v165
        %v167 = vadd.f32 %v163, %v166
        %vm168 = vweird.f32 %v162
        %vm169 = vweird.f32 %v163
        %vm170 = vmor %vm168, %vm169
        %v171 = vsel %vm170, %v163, %v167
        %v172 = vand.u32 2147483647, %v162
        %vm173 = vcmp.eq.f32.partialorder %v172, 8.507059e+37
        %v174 = vand.u32 %v162, 2147483648
        %v175 = vor.u32 1.1754944e-38, %v174
        %v176 = vsel %vm173, %v175, %v171
        %v177 = vmul.f32 %v161, %v176
        %vm178 = vcmp.ge.f32.partialorder %v157, 0.0
        %v179 = vsel %vm178, %v177, %v176
        %v180 = vsel %vm178, %v176, %v177
        %181 = vst [vmem:[%s153] sm:$0x3] %v179
        %s182 = scalar_lea.vmem %s153, 2 [#allocation5]
        %183 = vst [vmem:[%s182] sm:$0x3] %v180
        %s184 = sand.u32 %s68, 1
        %s185 = scalar_lea.sflag [#allocation4], %s184
        %s186 = sand.u32 %s68, 1
        %s187 = smul.addr %s186, 4
        %s188 = scalar_lea.vmem [#allocation5], %s187
        // Predicated region
        $region29: #{tpu_custom_call.1} parent=23 // pred_check
          %p189 = pneg %p78
        $region30: #{tpu_custom_call.1} parent=23 // pred_check_branch
          %191 = sbr.rel (%p189) target = $region32
        $region31: #{tpu_custom_call.1} parent=23 // pred_region
          %193 = vsyncadd %s185, 0
          %s194 = smul.addr %s22, 2
          %s195 = sadd.s32 %s23, %s194
          %s196 = smul.addr %s195, 2
          %s197 = scalar_lea.hbm %s1, %s196
          %s198 = sshll.u32 %s188, 4
          %s199 = int_to_ptr.vmem [resolvable:$true] %s198
          %s200 = sshll.u32 %s197, 4
          %s201 = int_to_ptr.hbm [resolvable:$true] %s200
          %206 = dma.vmem_to_hbm [thread:$0]  %s199, 64, %s201, %s185, 32, 32, 2
        $region32: #{tpu_custom_call.1} parent=23 // pred_fallthru
          _
      $region24: #{tpu_custom_call.1} parent=5 // pred_fallthru
        _
      %p207 = scmp.le.s32.totalorder 2, %s13
      // Predicated region
      $region33: #{tpu_custom_call.1} parent=5 // pred_check
        %p208 = pneg %p207
      $region34: #{tpu_custom_call.1} parent=5 // pred_check_branch
        %210 = sbr.rel (%p208) target = $region36
      $region35: #{tpu_custom_call.1} parent=5 // pred_region
        %s211 = ssub.s32 %s13, 2
        // Predicated region
        $region37: #{tpu_custom_call.1} parent=35 // pred_check
          %p212 = pneg %p84
        $region38: #{tpu_custom_call.1} parent=35 // pred_check_branch
          %214 = sbr.rel (%p212) target = $region40
        $region39: #{tpu_custom_call.1} parent=35 // pred_region
          %s215 = sand.u32 %s69, 1
          %s216 = scalar_lea.sflag [#allocation4], %s215
          %s217 = sand.u32 %s69, 1
          %s218 = smul.addr %s217, 4
          %s219 = scalar_lea.vmem [#allocation5], %s218
          %221 = dma.done %s216, 64
        $region40: #{tpu_custom_call.1} parent=35 // pred_fallthru
          _
      $region36: #{tpu_custom_call.1} parent=5 // pred_fallthru
        _
    $region6: #{tpu_custom_call.1} parent=1 // loop_footer
      %s17 = sadd.s32 1, %s13
    $region7: #{tpu_custom_call.1} parent=1 // loop_footer_branch
      %12 = sbr.rel target = $region3
    $region8: #{tpu_custom_call.1} parent=1 // loop_exit
      _
    %222 = vsyncpa [#allocation3], 1
    %s223 = scalar_lea.sflag [#allocation3], 1
    %224 = vsyncpa %s223, 1
    %225 = vsyncpa [#allocation4], 1
    %s226 = scalar_lea.sflag [#allocation4], 1
    %227 = vsyncpa %s226, 1

</llo_original>
